<compile_context>
chip_gen: v7x
topology: tpu7x:2x2x1
jax: 0.10.0
libtpu: 0.0.40
codegen_flags: <defaults>
</compile_context>

<pallas_src>
import functools

import jax
import jax.numpy as jnp
from jax.experimental import pallas as pl
from jax.experimental.pallas import tpu as pltpu


_MAX_BLOCK_BATCH = 16   # bounds the static per-row unroll inside the kernel


def _ddff_fused_kernel(bias_ref, w_ref, x_ref, out_ref, *, W):
    """Fused conv1(3x3) + scoring(1x1) over one block of batch rows.

    bias_ref: SMEM (1,)          folded bias  b1 * sum(ws)     [scalar prefetch]
    w_ref   : VMEM (FC, 9)       folded weights ws[f] * w1[c, kh, kw]
    x_ref   : VMEM (Bt, FC, HW)  Bt batch rows, FS*C planes, flattened H*W pixels
    out_ref : VMEM (Bt, 1, HW)
    """
    Bt, _, HW = x_ref.shape
    bias = bias_ref[0]
    w = w_ref[...]                                            # (FC, 9)
    w_taps = [w[:, t:t + 1] for t in range(9)]                # 9 x (FC, 1)

    # Lane-position validity masks, shared by every batch row and hoisted out of
    # the tap loop.  They act on (1, HW) partials, i.e. FC-times cheaper than
    # masking the full input slab.
    pos = jax.lax.broadcasted_iota(jnp.int32, (1, HW), 1)
    col = pos % W
    col_masks = (col >= 1, None, col <= W - 2)                # kw = 0, 1, 2
    row_masks = (pos >= W, None, pos < HW - W)                # kh = 0, 1, 2
    tap_masks = []
    for kh in range(3):
        for kw in range(3):
            m = row_masks[kh]
            if col_masks[kw] is not None:
                m = col_masks[kw] if m is None else jnp.logical_and(
                    m, col_masks[kw])
            tap_masks.append(m)

    # Bt is small and static (<= _MAX_BLOCK_BATCH): rows are independent and the
    # unrolled blocks give the LLO scheduler full visibility.
    for b in range(Bt):
        xb = x_ref[b]                                         # (FC, HW)
        acc = jnp.zeros((1, HW), jnp.float32)
        for kh in range(3):
            for kw in range(3):
                t = kh * 3 + kw
                d = (kh - 1) * W + (kw - 1)                   # flattened tap offset
                # Fold the channel reduction first; the lane shift commutes
                # with it, so roll + mask see a single (1, HW) plane.
                y = jnp.sum(xb * w_taps[t], axis=0, keepdims=True)   # (1, HW)
                if d != 0:
                    # y'[p] = y[(p + d) mod HW]; wrapped pixels are masked below.
                    y = pltpu.roll(y, (-d) % HW, 1)
                if tap_masks[t] is not None:
                    y = jnp.where(tap_masks[t], y, 0.0)
                acc = acc + y
        out_ref[b] = (acc + bias).astype(out_ref.dtype)


def _tiling_plan(B, FC, HW):
    """Generation-aware (Bt, vmem_limit) choice with honest VMEM accounting."""
    try:
        kind = jax.devices()[0].device_kind.lower()
    except Exception:
        kind = ""
    is_v7 = ("v7" in kind) or ("7x" in kind)
    multi_tc = is_v7 or ("v4" in kind) or ("v5p" in kind)

    # Per-batch-row cost of one grid step: double-buffered input block +
    # double-buffered output block.  Fixed part: ~one resident plane-set of
    # in-kernel live values, the weight tile, and slack.
    per_row = (2 * FC + 2) * HW * 4
    fixed = FC * HW * 4 + (256 << 10)
    budget = (16 << 20) if is_v7 else (24 << 20)   # v7x: only 64 MiB physical VMEM
    vmem_limit = 32 << 20                          # ample for Bt <= _MAX_BLOCK_BATCH

    max_bt = max(1, min((budget - fixed) // per_row, _MAX_BLOCK_BATCH, B))
    divisors = [d for d in range(1, B + 1) if B % d == 0 and d <= max_bt] or [1]
    if multi_tc:
        # Keep >= 2 "parallel" grid steps so every TensorCore gets work.
        pref = [d for d in divisors if B // d >= 2] or divisors
        bt = max(pref)
    else:
        # Single TensorCore: fewest pipeline steps wins (~0.35 us/step overhead).
        bt = max(divisors)
    return bt, vmem_limit


def ddff_net_dummy_forward(x, w1, b1, ws):
    """x: (B, FS, C, H, W) f32; w1: (1, C, 3, 3); b1: (1,); ws: (1, FS, 1, 1)."""
    B, FS, C, H, W = x.shape
    FC, HW = FS * C, H * W

    # Fold scoring (1x1, no bias) into conv1 (3x3, bias) on the host.
    w_comb = (ws.reshape(FS, 1, 1, 1).astype(jnp.float32)
              * w1.reshape(1, C, 3, 3).astype(jnp.float32)).reshape(FC, 9)
    bias_total = (b1.reshape(1).astype(jnp.float32)
                  * jnp.sum(ws).astype(jnp.float32))           # (1,)

    # Pure reshape (no copy, no pad): contiguous, lane-dense rows of H*W pixels.
    # TODO(synk): for HBM-bound (large B) workloads stream x as bfloat16 and
    # widen to f32 in-kernel for ~2x input bandwidth; kept f32 here for
    # bit-tight validation at this size.
    x_flat = x.reshape(B, FC, HW).astype(jnp.float32)

    Bt, vmem_limit = _tiling_plan(B, FC, HW)
    grid = (B // Bt,)

    grid_spec = pltpu.PrefetchScalarGridSpec(
        num_scalar_prefetch=1,                        # folded bias -> SMEM
        grid=grid,
        in_specs=[
            pl.BlockSpec((FC, 9), lambda b, bias: (0, 0)),
            pl.BlockSpec((Bt, FC, HW), lambda b, bias: (b, 0, 0)),
        ],
        # TODO(synk): for large B switch to a 2-D (Bt, HW) out block with
        # Bt % 8 == 0 for fully unmasked (8,128) output tiles; irrelevant here.
        out_specs=pl.BlockSpec((Bt, 1, HW), lambda b, bias: (b, 0, 0)),
    )

    out_flat = pl.pallas_call(
        functools.partial(_ddff_fused_kernel, W=W),
        out_shape=jax.ShapeDtypeStruct((B, 1, HW), jnp.float32),
        grid_spec=grid_spec,
        compiler_params=pltpu.CompilerParams(
            dimension_semantics=("parallel",),
            vmem_limit_bytes=vmem_limit,
        ),
    )(bias_total, w_comb, x_flat)

    return out_flat.reshape(B, 1, H, W)


def ddff_net_dummy_reference(x, w1, b1, ws):
    """Pure-JAX reference mirroring the PyTorch forward."""
    B, FS, C, H, W = x.shape
    xr = x.reshape(B * FS, C, H, W)
    y = jax.lax.conv_general_dilated(
        xr, w1, window_strides=(1, 1), padding=((1, 1), (1, 1)),
        dimension_numbers=("NCHW", "OIHW", "NCHW"))
    y = y + b1.reshape(1, 1, 1, 1)
    y = y.reshape(B, FS, H, W)
    out = jax.lax.conv_general_dilated(
        y, ws, window_strides=(1, 1), padding="VALID",
        dimension_numbers=("NCHW", "OIHW", "NCHW"))
    return out


if __name__ == "__main__":
    # Shapes consistent with the module defaults: focal_stack_size=10,
    # input_dim=3, output_dim=1, use_scoring=True.
    B, FS, C, H, W = 2, 10, 3, 16, 16

    key = jax.random.PRNGKey(0)
    kx, kw1, kb1, kws = jax.random.split(key, 4)

    x = jax.random.normal(kx, (B, FS, C, H, W), dtype=jnp.float32)
    # conv1: Conv2d(3, 1, 3, padding=1) -> weight (1, 3, 3, 3), bias (1,)
    w1 = jax.random.normal(kw1, (1, C, 3, 3), dtype=jnp.float32) * 0.1
    b1 = jax.random.normal(kb1, (1,), dtype=jnp.float32) * 0.1
    # scoring: Conv2d(10, 1, 1, bias=False) -> weight (1, 10, 1, 1)
    ws = jax.random.normal(kws, (1, FS, 1, 1), dtype=jnp.float32) * 0.1

    out = ddff_net_dummy_forward(x, w1, b1, ws)
    out = jax.block_until_ready(out)

    ref = ddff_net_dummy_reference(x, w1, b1, ws)
    assert out.shape == (B, 1, H, W), out.shape
    max_err = float(jnp.max(jnp.abs(out - ref)))
    assert jnp.allclose(out, ref, atol=1e-4, rtol=1e-4), max_err

    print("KERNEL_OK")
</pallas_src>

<mosaic_0001>
module attributes {stable_mosaic.version = 11 : i64} {
  func.func @_ddff_fused_kernel(%arg0: i32, %arg1: memref<1xf32, #tpu.memory_space<smem>>, %arg2: memref<30x9xf32, #tpu.memory_space<vmem>>, %arg3: memref<2x30x256xf32, #tpu.memory_space<vmem>>, %arg4: memref<2x1x256xf32, #tpu.memory_space<vmem>>) attributes {dimension_semantics = [#tpu.dimension_semantics<parallel>], iteration_bounds = array<i64: 1>, scalar_prefetch = 1 : i64, scratch_operands = 0 : i64, tpu.core_type = #tpu.core_type<tc>, window_params = [{pipeline_mode = #tpu.pipeline_mode<synchronous>, transform_indices = @transform_0, window_bounds = array<i64: 30, 9>}, {transform_indices = @transform_1, window_bounds = array<i64: 2, 30, 256>}, {transform_indices = @transform_2, window_bounds = array<i64: 2, 1, 256>}]} {
    %c0 = arith.constant 0 : index
    %0 = memref.load %arg1[%c0] : memref<1xf32, #tpu.memory_space<smem>>
    %c0_0 = arith.constant 0 : index
    %c0_1 = arith.constant 0 : index
    %1 = vector.load %arg2[%c0_0, %c0_1] : memref<30x9xf32, #tpu.memory_space<vmem>>, vector<30x9xf32>
    %2 = vector.extract_strided_slice %1 {offsets = [0, 0], sizes = [30, 1], strides = [1, 1]} : vector<30x9xf32> to vector<30x1xf32>
    %3 = vector.extract_strided_slice %1 {offsets = [0, 1], sizes = [30, 1], strides = [1, 1]} : vector<30x9xf32> to vector<30x1xf32>
    %4 = vector.extract_strided_slice %1 {offsets = [0, 2], sizes = [30, 1], strides = [1, 1]} : vector<30x9xf32> to vector<30x1xf32>
    %5 = vector.extract_strided_slice %1 {offsets = [0, 3], sizes = [30, 1], strides = [1, 1]} : vector<30x9xf32> to vector<30x1xf32>
    %6 = vector.extract_strided_slice %1 {offsets = [0, 4], sizes = [30, 1], strides = [1, 1]} : vector<30x9xf32> to vector<30x1xf32>
    %7 = vector.extract_strided_slice %1 {offsets = [0, 5], sizes = [30, 1], strides = [1, 1]} : vector<30x9xf32> to vector<30x1xf32>
    %8 = vector.extract_strided_slice %1 {offsets = [0, 6], sizes = [30, 1], strides = [1, 1]} : vector<30x9xf32> to vector<30x1xf32>
    %9 = vector.extract_strided_slice %1 {offsets = [0, 7], sizes = [30, 1], strides = [1, 1]} : vector<30x9xf32> to vector<30x1xf32>
    %10 = vector.extract_strided_slice %1 {offsets = [0, 8], sizes = [30, 1], strides = [1, 1]} : vector<30x9xf32> to vector<30x1xf32>
    %11 = tpu.iota {dimensions = array<i32: 1>} : vector<1x256xi32>
    %c16_i32 = arith.constant 16 : i32
    %c0_i32 = arith.constant 0 : i32
    %12 = arith.cmpi eq, %c16_i32, %c0_i32 : i32
    %c1_i32 = arith.constant 1 : i32
    %13 = arith.select %12, %c1_i32, %c16_i32 : i32
    %14 = vector.broadcast %13 : i32 to vector<1x256xi32>
    %15 = arith.remsi %11, %14 : vector<1x256xi32>
    %c0_i32_2 = arith.constant 0 : i32
    %16 = vector.broadcast %c0_i32_2 : i32 to vector<1x256xi32>
    %17 = arith.cmpi ne, %15, %16 : vector<1x256xi32>
    %c0_i32_3 = arith.constant 0 : i32
    %18 = vector.broadcast %c0_i32_3 : i32 to vector<1x256xi32>
    %19 = arith.cmpi slt, %15, %18 : vector<1x256xi32>
    %c0_i32_4 = arith.constant 0 : i32
    %20 = arith.cmpi slt, %13, %c0_i32_4 : i32
    %21 = vector.broadcast %20 : i1 to vector<1x256xi1>
    %22 = vector.broadcast %21 : vector<1x256xi1> to vector<1x256xi1>
    %23 = arith.xori %19, %22 : vector<1x256xi1>
    %24 = arith.andi %23, %17 : vector<1x256xi1>
    %25 = vector.broadcast %13 : i32 to vector<1x256xi32>
    %26 = arith.addi %15, %25 : vector<1x256xi32>
    %27 = arith.select %24, %26, %15 : vector<1x256xi1>, vector<1x256xi32>
    %c1_i32_5 = arith.constant 1 : i32
    %28 = vector.broadcast %c1_i32_5 : i32 to vector<1x256xi32>
    %29 = arith.cmpi sge, %27, %28 : vector<1x256xi32>
    %c14_i32 = arith.constant 14 : i32
    %30 = vector.broadcast %c14_i32 : i32 to vector<1x256xi32>
    %31 = arith.cmpi sle, %27, %30 : vector<1x256xi32>
    %c16_i32_6 = arith.constant 16 : i32
    %32 = vector.broadcast %c16_i32_6 : i32 to vector<1x256xi32>
    %33 = arith.cmpi sge, %11, %32 : vector<1x256xi32>
    %c240_i32 = arith.constant 240 : i32
    %34 = vector.broadcast %c240_i32 : i32 to vector<1x256xi32>
    %35 = arith.cmpi slt, %11, %34 : vector<1x256xi32>
    %36 = arith.andi %33, %29 : vector<1x256xi1>
    %37 = arith.andi %33, %31 : vector<1x256xi1>
    %38 = arith.andi %35, %29 : vector<1x256xi1>
    %39 = arith.andi %35, %31 : vector<1x256xi1>
    %c0_7 = arith.constant 0 : index
    %c0_8 = arith.constant 0 : index
    %c0_9 = arith.constant 0 : index
    %40 = vector.load %arg3[%c0_7, %c0_8, %c0_9] : memref<2x30x256xf32, #tpu.memory_space<vmem>>, vector<1x30x256xf32>
    %41 = vector.shape_cast %40 : vector<1x30x256xf32> to vector<30x256xf32>
    %cst = arith.constant 0.000000e+00 : f32
    %42 = vector.broadcast %cst : f32 to vector<1x256xf32>
    %43 = vector.broadcast %2 : vector<30x1xf32> to vector<30x256xf32>
    %44 = arith.mulf %41, %43 : vector<30x256xf32>
    %cst_10 = arith.constant dense<0.000000e+00> : vector<256xf32>
    %45 = vector.multi_reduction <add>, %44, %cst_10 [0] : vector<30x256xf32> to vector<256xf32>
    %46 = vector.shape_cast %45 : vector<256xf32> to vector<1x256xf32>
    %c17_i32 = arith.constant 17 : i32
    %47 = tpu.dynamic_rotate %46 by %c17_i32 dim 1 : vector<1x256xf32>, i32 -> vector<1x256xf32>
    %cst_11 = arith.constant 0.000000e+00 : f32
    %48 = vector.broadcast %cst_11 : f32 to vector<1x256xf32>
    %49 = arith.select %36, %47, %48 : vector<1x256xi1>, vector<1x256xf32>
    %50 = arith.addf %42, %49 : vector<1x256xf32>
    %51 = vector.broadcast %3 : vector<30x1xf32> to vector<30x256xf32>
    %52 = arith.mulf %41, %51 : vector<30x256xf32>
    %cst_12 = arith.constant dense<0.000000e+00> : vector<256xf32>
    %53 = vector.multi_reduction <add>, %52, %cst_12 [0] : vector<30x256xf32> to vector<256xf32>
    %54 = vector.shape_cast %53 : vector<256xf32> to vector<1x256xf32>
    %c16_i32_13 = arith.constant 16 : i32
    %55 = tpu.dynamic_rotate %54 by %c16_i32_13 dim 1 : vector<1x256xf32>, i32 -> vector<1x256xf32>
    %cst_14 = arith.constant 0.000000e+00 : f32
    %56 = vector.broadcast %cst_14 : f32 to vector<1x256xf32>
    %57 = arith.select %33, %55, %56 : vector<1x256xi1>, vector<1x256xf32>
    %58 = arith.addf %50, %57 : vector<1x256xf32>
    %59 = vector.broadcast %4 : vector<30x1xf32> to vector<30x256xf32>
    %60 = arith.mulf %41, %59 : vector<30x256xf32>
    %cst_15 = arith.constant dense<0.000000e+00> : vector<256xf32>
    %61 = vector.multi_reduction <add>, %60, %cst_15 [0] : vector<30x256xf32> to vector<256xf32>
    %62 = vector.shape_cast %61 : vector<256xf32> to vector<1x256xf32>
    %c15_i32 = arith.constant 15 : i32
    %63 = tpu.dynamic_rotate %62 by %c15_i32 dim 1 : vector<1x256xf32>, i32 -> vector<1x256xf32>
    %cst_16 = arith.constant 0.000000e+00 : f32
    %64 = vector.broadcast %cst_16 : f32 to vector<1x256xf32>
    %65 = arith.select %37, %63, %64 : vector<1x256xi1>, vector<1x256xf32>
    %66 = arith.addf %58, %65 : vector<1x256xf32>
    %67 = vector.broadcast %5 : vector<30x1xf32> to vector<30x256xf32>
    %68 = arith.mulf %41, %67 : vector<30x256xf32>
    %cst_17 = arith.constant dense<0.000000e+00> : vector<256xf32>
    %69 = vector.multi_reduction <add>, %68, %cst_17 [0] : vector<30x256xf32> to vector<256xf32>
    %70 = vector.shape_cast %69 : vector<256xf32> to vector<1x256xf32>
    %c1_i32_18 = arith.constant 1 : i32
    %71 = tpu.dynamic_rotate %70 by %c1_i32_18 dim 1 : vector<1x256xf32>, i32 -> vector<1x256xf32>
    %cst_19 = arith.constant 0.000000e+00 : f32
    %72 = vector.broadcast %cst_19 : f32 to vector<1x256xf32>
    %73 = arith.select %29, %71, %72 : vector<1x256xi1>, vector<1x256xf32>
    %74 = arith.addf %66, %73 : vector<1x256xf32>
    %75 = vector.broadcast %6 : vector<30x1xf32> to vector<30x256xf32>
    %76 = arith.mulf %41, %75 : vector<30x256xf32>
    %cst_20 = arith.constant dense<0.000000e+00> : vector<256xf32>
    %77 = vector.multi_reduction <add>, %76, %cst_20 [0] : vector<30x256xf32> to vector<256xf32>
    %78 = vector.shape_cast %77 : vector<256xf32> to vector<1x256xf32>
    %79 = arith.addf %74, %78 : vector<1x256xf32>
    %80 = vector.broadcast %7 : vector<30x1xf32> to vector<30x256xf32>
    %81 = arith.mulf %41, %80 : vector<30x256xf32>
    %cst_21 = arith.constant dense<0.000000e+00> : vector<256xf32>
    %82 = vector.multi_reduction <add>, %81, %cst_21 [0] : vector<30x256xf32> to vector<256xf32>
    %83 = vector.shape_cast %82 : vector<256xf32> to vector<1x256xf32>
    %c255_i32 = arith.constant 255 : i32
    %84 = tpu.dynamic_rotate %83 by %c255_i32 dim 1 : vector<1x256xf32>, i32 -> vector<1x256xf32>
    %cst_22 = arith.constant 0.000000e+00 : f32
    %85 = vector.broadcast %cst_22 : f32 to vector<1x256xf32>
    %86 = arith.select %31, %84, %85 : vector<1x256xi1>, vector<1x256xf32>
    %87 = arith.addf %79, %86 : vector<1x256xf32>
    %88 = vector.broadcast %8 : vector<30x1xf32> to vector<30x256xf32>
    %89 = arith.mulf %41, %88 : vector<30x256xf32>
    %cst_23 = arith.constant dense<0.000000e+00> : vector<256xf32>
    %90 = vector.multi_reduction <add>, %89, %cst_23 [0] : vector<30x256xf32> to vector<256xf32>
    %91 = vector.shape_cast %90 : vector<256xf32> to vector<1x256xf32>
    %c241_i32 = arith.constant 241 : i32
    %92 = tpu.dynamic_rotate %91 by %c241_i32 dim 1 : vector<1x256xf32>, i32 -> vector<1x256xf32>
    %cst_24 = arith.constant 0.000000e+00 : f32
    %93 = vector.broadcast %cst_24 : f32 to vector<1x256xf32>
    %94 = arith.select %38, %92, %93 : vector<1x256xi1>, vector<1x256xf32>
    %95 = arith.addf %87, %94 : vector<1x256xf32>
    %96 = vector.broadcast %9 : vector<30x1xf32> to vector<30x256xf32>
    %97 = arith.mulf %41, %96 : vector<30x256xf32>
    %cst_25 = arith.constant dense<0.000000e+00> : vector<256xf32>
    %98 = vector.multi_reduction <add>, %97, %cst_25 [0] : vector<30x256xf32> to vector<256xf32>
    %99 = vector.shape_cast %98 : vector<256xf32> to vector<1x256xf32>
    %c240_i32_26 = arith.constant 240 : i32
    %100 = tpu.dynamic_rotate %99 by %c240_i32_26 dim 1 : vector<1x256xf32>, i32 -> vector<1x256xf32>
    %cst_27 = arith.constant 0.000000e+00 : f32
    %101 = vector.broadcast %cst_27 : f32 to vector<1x256xf32>
    %102 = arith.select %35, %100, %101 : vector<1x256xi1>, vector<1x256xf32>
    %103 = arith.addf %95, %102 : vector<1x256xf32>
    %104 = vector.broadcast %10 : vector<30x1xf32> to vector<30x256xf32>
    %105 = arith.mulf %41, %104 : vector<30x256xf32>
    %cst_28 = arith.constant dense<0.000000e+00> : vector<256xf32>
    %106 = vector.multi_reduction <add>, %105, %cst_28 [0] : vector<30x256xf32> to vector<256xf32>
    %107 = vector.shape_cast %106 : vector<256xf32> to vector<1x256xf32>
    %c239_i32 = arith.constant 239 : i32
    %108 = tpu.dynamic_rotate %107 by %c239_i32 dim 1 : vector<1x256xf32>, i32 -> vector<1x256xf32>
    %cst_29 = arith.constant 0.000000e+00 : f32
    %109 = vector.broadcast %cst_29 : f32 to vector<1x256xf32>
    %110 = arith.select %39, %108, %109 : vector<1x256xi1>, vector<1x256xf32>
    %111 = arith.addf %103, %110 : vector<1x256xf32>
    %112 = vector.broadcast %0 : f32 to vector<1x256xf32>
    %113 = arith.addf %111, %112 : vector<1x256xf32>
    %c0_30 = arith.constant 0 : index
    %c0_31 = arith.constant 0 : index
    %c0_32 = arith.constant 0 : index
    %114 = vector.load %arg4[%c0_30, %c0_31, %c0_32] : memref<2x1x256xf32, #tpu.memory_space<vmem>>, vector<1x1x256xf32>
    %115 = vector.shape_cast %114 : vector<1x1x256xf32> to vector<1x256xf32>
    %116 = vector.shape_cast %113 : vector<1x256xf32> to vector<1x1x256xf32>
    tpu.vector_store %arg4[%c0_30, %c0_31, %c0_32], %116 {strides = array<i32>} : memref<2x1x256xf32, #tpu.memory_space<vmem>>, vector<1x1x256xf32>,
    %c1 = arith.constant 1 : index
    %c0_33 = arith.constant 0 : index
    %c0_34 = arith.constant 0 : index
    %117 = vector.load %arg3[%c1, %c0_33, %c0_34] : memref<2x30x256xf32, #tpu.memory_space<vmem>>, vector<1x30x256xf32>
    %118 = vector.shape_cast %117 : vector<1x30x256xf32> to vector<30x256xf32>
    %cst_35 = arith.constant 0.000000e+00 : f32
    %119 = vector.broadcast %cst_35 : f32 to vector<1x256xf32>
    %120 = vector.broadcast %2 : vector<30x1xf32> to vector<30x256xf32>
    %121 = arith.mulf %118, %120 : vector<30x256xf32>
    %cst_36 = arith.constant dense<0.000000e+00> : vector<256xf32>
    %122 = vector.multi_reduction <add>, %121, %cst_36 [0] : vector<30x256xf32> to vector<256xf32>
    %123 = vector.shape_cast %122 : vector<256xf32> to vector<1x256xf32>
    %c17_i32_37 = arith.constant 17 : i32
    %124 = tpu.dynamic_rotate %123 by %c17_i32_37 dim 1 : vector<1x256xf32>, i32 -> vector<1x256xf32>
    %cst_38 = arith.constant 0.000000e+00 : f32
    %125 = vector.broadcast %cst_38 : f32 to vector<1x256xf32>
    %126 = arith.select %36, %124, %125 : vector<1x256xi1>, vector<1x256xf32>
    %127 = arith.addf %119, %126 : vector<1x256xf32>
    %128 = vector.broadcast %3 : vector<30x1xf32> to vector<30x256xf32>
    %129 = arith.mulf %118, %128 : vector<30x256xf32>
    %cst_39 = arith.constant dense<0.000000e+00> : vector<256xf32>
    %130 = vector.multi_reduction <add>, %129, %cst_39 [0] : vector<30x256xf32> to vector<256xf32>
    %131 = vector.shape_cast %130 : vector<256xf32> to vector<1x256xf32>
    %c16_i32_40 = arith.constant 16 : i32
    %132 = tpu.dynamic_rotate %131 by %c16_i32_40 dim 1 : vector<1x256xf32>, i32 -> vector<1x256xf32>
    %cst_41 = arith.constant 0.000000e+00 : f32
    %133 = vector.broadcast %cst_41 : f32 to vector<1x256xf32>
    %134 = arith.select %33, %132, %133 : vector<1x256xi1>, vector<1x256xf32>
    %135 = arith.addf %127, %134 : vector<1x256xf32>
    %136 = vector.broadcast %4 : vector<30x1xf32> to vector<30x256xf32>
    %137 = arith.mulf %118, %136 : vector<30x256xf32>
    %cst_42 = arith.constant dense<0.000000e+00> : vector<256xf32>
    %138 = vector.multi_reduction <add>, %137, %cst_42 [0] : vector<30x256xf32> to vector<256xf32>
    %139 = vector.shape_cast %138 : vector<256xf32> to vector<1x256xf32>
    %c15_i32_43 = arith.constant 15 : i32
    %140 = tpu.dynamic_rotate %139 by %c15_i32_43 dim 1 : vector<1x256xf32>, i32 -> vector<1x256xf32>
    %cst_44 = arith.constant 0.000000e+00 : f32
    %141 = vector.broadcast %cst_44 : f32 to vector<1x256xf32>
    %142 = arith.select %37, %140, %141 : vector<1x256xi1>, vector<1x256xf32>
    %143 = arith.addf %135, %142 : vector<1x256xf32>
    %144 = vector.broadcast %5 : vector<30x1xf32> to vector<30x256xf32>
    %145 = arith.mulf %118, %144 : vector<30x256xf32>
    %cst_45 = arith.constant dense<0.000000e+00> : vector<256xf32>
    %146 = vector.multi_reduction <add>, %145, %cst_45 [0] : vector<30x256xf32> to vector<256xf32>
    %147 = vector.shape_cast %146 : vector<256xf32> to vector<1x256xf32>
    %c1_i32_46 = arith.constant 1 : i32
    %148 = tpu.dynamic_rotate %147 by %c1_i32_46 dim 1 : vector<1x256xf32>, i32 -> vector<1x256xf32>
    %cst_47 = arith.constant 0.000000e+00 : f32
    %149 = vector.broadcast %cst_47 : f32 to vector<1x256xf32>
    %150 = arith.select %29, %148, %149 : vector<1x256xi1>, vector<1x256xf32>
    %151 = arith.addf %143, %150 : vector<1x256xf32>
    %152 = vector.broadcast %6 : vector<30x1xf32> to vector<30x256xf32>
    %153 = arith.mulf %118, %152 : vector<30x256xf32>
    %cst_48 = arith.constant dense<0.000000e+00> : vector<256xf32>
    %154 = vector.multi_reduction <add>, %153, %cst_48 [0] : vector<30x256xf32> to vector<256xf32>
    %155 = vector.shape_cast %154 : vector<256xf32> to vector<1x256xf32>
    %156 = arith.addf %151, %155 : vector<1x256xf32>
    %157 = vector.broadcast %7 : vector<30x1xf32> to vector<30x256xf32>
    %158 = arith.mulf %118, %157 : vector<30x256xf32>
    %cst_49 = arith.constant dense<0.000000e+00> : vector<256xf32>
    %159 = vector.multi_reduction <add>, %158, %cst_49 [0] : vector<30x256xf32> to vector<256xf32>
    %160 = vector.shape_cast %159 : vector<256xf32> to vector<1x256xf32>
    %c255_i32_50 = arith.constant 255 : i32
    %161 = tpu.dynamic_rotate %160 by %c255_i32_50 dim 1 : vector<1x256xf32>, i32 -> vector<1x256xf32>
    %cst_51 = arith.constant 0.000000e+00 : f32
    %162 = vector.broadcast %cst_51 : f32 to vector<1x256xf32>
    %163 = arith.select %31, %161, %162 : vector<1x256xi1>, vector<1x256xf32>
    %164 = arith.addf %156, %163 : vector<1x256xf32>
    %165 = vector.broadcast %8 : vector<30x1xf32> to vector<30x256xf32>
    %166 = arith.mulf %118, %165 : vector<30x256xf32>
    %cst_52 = arith.constant dense<0.000000e+00> : vector<256xf32>
    %167 = vector.multi_reduction <add>, %166, %cst_52 [0] : vector<30x256xf32> to vector<256xf32>
    %168 = vector.shape_cast %167 : vector<256xf32> to vector<1x256xf32>
    %c241_i32_53 = arith.constant 241 : i32
    %169 = tpu.dynamic_rotate %168 by %c241_i32_53 dim 1 : vector<1x256xf32>, i32 -> vector<1x256xf32>
    %cst_54 = arith.constant 0.000000e+00 : f32
    %170 = vector.broadcast %cst_54 : f32 to vector<1x256xf32>
    %171 = arith.select %38, %169, %170 : vector<1x256xi1>, vector<1x256xf32>
    %172 = arith.addf %164, %171 : vector<1x256xf32>
    %173 = vector.broadcast %9 : vector<30x1xf32> to vector<30x256xf32>
    %174 = arith.mulf %118, %173 : vector<30x256xf32>
    %cst_55 = arith.constant dense<0.000000e+00> : vector<256xf32>
    %175 = vector.multi_reduction <add>, %174, %cst_55 [0] : vector<30x256xf32> to vector<256xf32>
    %176 = vector.shape_cast %175 : vector<256xf32> to vector<1x256xf32>
    %c240_i32_56 = arith.constant 240 : i32
    %177 = tpu.dynamic_rotate %176 by %c240_i32_56 dim 1 : vector<1x256xf32>, i32 -> vector<1x256xf32>
    %cst_57 = arith.constant 0.000000e+00 : f32
    %178 = vector.broadcast %cst_57 : f32 to vector<1x256xf32>
    %179 = arith.select %35, %177, %178 : vector<1x256xi1>, vector<1x256xf32>
    %180 = arith.addf %172, %179 : vector<1x256xf32>
    %181 = vector.broadcast %10 : vector<30x1xf32> to vector<30x256xf32>
    %182 = arith.mulf %118, %181 : vector<30x256xf32>
    %cst_58 = arith.constant dense<0.000000e+00> : vector<256xf32>
    %183 = vector.multi_reduction <add>, %182, %cst_58 [0] : vector<30x256xf32> to vector<256xf32>
    %184 = vector.shape_cast %183 : vector<256xf32> to vector<1x256xf32>
    %c239_i32_59 = arith.constant 239 : i32
    %185 = tpu.dynamic_rotate %184 by %c239_i32_59 dim 1 : vector<1x256xf32>, i32 -> vector<1x256xf32>
    %cst_60 = arith.constant 0.000000e+00 : f32
    %186 = vector.broadcast %cst_60 : f32 to vector<1x256xf32>
    %187 = arith.select %39, %185, %186 : vector<1x256xi1>, vector<1x256xf32>
    %188 = arith.addf %180, %187 : vector<1x256xf32>
    %189 = vector.broadcast %0 : f32 to vector<1x256xf32>
    %190 = arith.addf %188, %189 : vector<1x256xf32>
    %c1_61 = arith.constant 1 : index
    %c0_62 = arith.constant 0 : index
    %c0_63 = arith.constant 0 : index
    %191 = vector.load %arg4[%c1_61, %c0_62, %c0_63] : memref<2x1x256xf32, #tpu.memory_space<vmem>>, vector<1x1x256xf32>
    %192 = vector.shape_cast %191 : vector<1x1x256xf32> to vector<1x256xf32>
    %193 = vector.shape_cast %190 : vector<1x256xf32> to vector<1x1x256xf32>
    tpu.vector_store %arg4[%c1_61, %c0_62, %c0_63], %193 {strides = array<i32>} : memref<2x1x256xf32, #tpu.memory_space<vmem>>, vector<1x1x256xf32>,
    return
  }
  func.func @transform_0(%arg0: i32, %arg1: memref<1xf32, #tpu.memory_space<smem>>) -> (i32, i32) {
    %c0_i32 = arith.constant 0 : i32
    %c0_i32_0 = arith.constant 0 : i32
    %c0_i32_1 = arith.constant 0 : i32
    return %c0_i32, %c0_i32_0 : i32, i32
  }
  func.func @transform_1(%arg0: i32, %arg1: memref<1xf32, #tpu.memory_space<smem>>) -> (i32, i32, i32) {
    %c0_i32 = arith.constant 0 : i32
    %c0_i32_0 = arith.constant 0 : i32
    %c0_i32_1 = arith.constant 0 : i32
    return %arg0, %c0_i32, %c0_i32_0 : i32, i32, i32
  }
  func.func @transform_2(%arg0: i32, %arg1: memref<1xf32, #tpu.memory_space<smem>>) -> (i32, i32, i32) {
    %c0_i32 = arith.constant 0 : i32
    %c0_i32_0 = arith.constant 0 : i32
    %c0_i32_1 = arith.constant 0 : i32
    return %arg0, %c0_i32, %c0_i32_0 : i32, i32, i32
  }
}

</mosaic_0001>

<llo_original>
// kernel: tpu_custom_call.1
$region0: #{tpu_custom_call.1}
  #allocation0 [shape = 'u32[]', space=smem, size = 0x4, offset = 0x4, fixed_abs, tag = 'smem constant byte address 0x4 - core index']
  #allocation1 [shape = 'u32[144,128]{1,0:T(1,128)}', space=vmem, size = 0x12000, scoped, tag = 'internal scratch']
  #allocation2 [shape = 's32[1]{0}', space=sflag, size = 0x4, scoped, tag = 'scoped memory for tpu_custom_call.1']
  #allocation3 [shape = 'f32[1]{0:T(128)S(6)}', space=smem, size = 0x200, scoped, tag = 'prefetched SMEM operand 0']
  %s0 = inlined_call_operand.<no memory space> [shape: f32[1], index: 0, kind: input, shape index: {}]
  %s1 = inlined_call_operand.vmem [shape: f32[30,9], index: 1, kind: input, shape index: {}]
  %s2 = inlined_call_operand.vmem [shape: f32[2,30,256], index: 2, kind: input, shape index: {}]
  %s3 = inlined_call_operand.hbm [shape: f32[2,1,256], index: 3, kind: output, shape index: {}]
  %s4 = sld [smem:[#allocation0]]
  $region18: #{tpu_custom_call.1} parent=0
    _
  %s6 = ssub.s32 1, %s4
  %s7 = scalar_select 0, %s6, %s4
  %8 = sst [smem:[#allocation3]] %s0
  $region1: #{tpu_custom_call.1} parent=0
    #allocation4 [shape = 'u8[2048]{0}', space=vmem, size = 0x800, scoped, tag = 'output window, operand 0, single buffered']
    #allocation5 [shape = 's32[1]{0}', space=sflag, size = 0x4, scoped, tag = 'scoped memory for tpu_custom_call.1']
    %9 = vsyncpa [#allocation5], 0
    // Predicated region
    $region2: #{tpu_custom_call.1} parent=1 // pred_check
      _
    $region3: #{tpu_custom_call.1} parent=1 // pred_check_branch
      %11 = sbr.rel (0) target = $region5
    $region4: #{tpu_custom_call.1} parent=1 // pred_region
      _
    $region5: #{tpu_custom_call.1} parent=1 // pred_fallthru
      _
    // Predicated region
    $region6: #{tpu_custom_call.1} parent=1 // pred_check
      _
    $region7: #{tpu_custom_call.1} parent=1 // pred_check_branch
      %13 = sbr.rel (0) target = $region9
    $region8: #{tpu_custom_call.1} parent=1 // pred_region
      _
    $region9: #{tpu_custom_call.1} parent=1 // pred_fallthru
      _
    %s14 = sld [smem:[#allocation3]]
    %v15 = vld [vmem:[%s1] sm:$0xff]
    %v16 = vld [vmem:[%s1 + $0x8] sm:$0xff]
    %v17 = vld [vmem:[%s1 + $0x10] sm:$0xff]
    %v18 = vld [vmem:[%s1 + $0x18] sm:$0x3f]
    %v19 = vlaneseq
    %v20 = vand.u32 %v19, 127
    %v21 = vadd.s32 %v20, 128
    %vm22 = vcmp.lt.s32.totalorder %v20, 0
    %v23 = vsub.s32 0, %v20
    %v24 = vsel %vm22, %v23, %v20
    %v25 = vshrl.u32 %v24, 4
    %v26 = vand.u32 %v24, 15
    %v27 = vsub.s32 0, %v26
    %v28 = vsel %vm22, %v27, %v26
    %vm29 = vcmp.lt.s32.totalorder %v21, 0
    %v30 = vsub.s32 0, %v21
    %v31 = vsel %vm29, %v30, %v21
    %v32 = vshrl.u32 %v31, 4
    %v33 = vand.u32 %v31, 15
    %v34 = vsub.s32 0, %v33
    %v35 = vsel %vm29, %v34, %v33
    %vm36 = vcmp.ne.s32.totalorder %v28, 0
    %vm37 = vcmp.ne.s32.totalorder %v35, 0
    %vm38 = vcmp.lt.s32.totalorder %v28, 0
    %vm39 = vcmp.lt.s32.totalorder %v35, 0
    %vm40 = vmand %vm38, %vm36
    %vm41 = vmand %vm39, %vm37
    %v42 = vadd.s32 %v28, 16
    %v43 = vadd.s32 %v35, 16
    %v44 = vsel %vm40, %v42, %v28
    %v45 = vsel %vm41, %v43, %v35
    %vm46 = vcmp.ge.s32.totalorder %v44, 1
    %vm47 = vcmp.ge.s32.totalorder %v45, 1
    %vm48 = vcmp.le.s32.totalorder %v44, 14
    %vm49 = vcmp.le.s32.totalorder %v45, 14
    %vm50 = vcmp.ge.s32.totalorder %v20, 16
    %vm51 = vcmp.ge.s32.totalorder %v21, 16
    %vm52 = vcmp.lt.s32.totalorder %v20, 240
    %vm53 = vcmp.lt.s32.totalorder %v21, 240
    %vm54 = vmand %vm50, %vm46
    %vm55 = vmand %vm51, %vm47
    %vm56 = vmand %vm50, %vm48
    %vm57 = vmand %vm51, %vm49
    %vm58 = vmand %vm52, %vm46
    %vm59 = vmand %vm53, %vm47
    %vm60 = vmand %vm52, %vm48
    %vm61 = vmand %vm53, %vm49
    %v62 = vld [vmem:[%s2] sm:$0xff]
    %v63 = vld [vmem:[%s2 + $0x8] sm:$0xff]
    %v64 = vld [vmem:[%s2 + $0x10] sm:$0xff]
    %v65 = vld [vmem:[%s2 + $0x18] sm:$0xff]
    %v66 = vld [vmem:[%s2 + $0x20] sm:$0xff]
    %v67 = vld [vmem:[%s2 + $0x28] sm:$0xff]
    %v68 = vld [vmem:[%s2 + $0x30] sm:$0x3f]
    %v69 = vld [vmem:[%s2 + $0x38] sm:$0x3f]
    %71 = vset.pattern.permute.xlu0 0
    %72 = vperm.xlu0 %71, %v15
    %v73 = vpop.permute.xlu0 %72
    %76 = vset.pattern.permute.xlu0 0
    %77 = vperm.xlu0 %76, %v16
    %v78 = vpop.permute.xlu0 %77
    %81 = vset.pattern.permute.xlu0 0
    %82 = vperm.xlu0 %81, %v17
    %v83 = vpop.permute.xlu0 %82
    %86 = vset.pattern.permute.xlu0 0
    %87 = vperm.xlu0 %86, %v18
    %v88 = vpop.permute.xlu0 %87
    %v90 = vmul.f32 %v62, %v73
    %v91 = vmul.f32 %v63, %v73
    %v92 = vmul.f32 %v64, %v78
    %v93 = vmul.f32 %v65, %v78
    %v94 = vmul.f32 %v66, %v83
    %v95 = vmul.f32 %v67, %v83
    %v96 = vmul.f32 %v68, %v88
    %v97 = vmul.f32 %v69, %v88
    %v98 = vadd.f32 %v90, %v92
    %v99 = vadd.f32 %v98, %v94
    %vm100 = vcmask 1045504
    %v101 = vsel %vm100, %v96, 0.0
    %v102 = vadd.f32 %v99, %v101
    %v103 = vrot.slane %v102, 4
    %v104 = vadd.f32 %v102, %v103
    %v105 = vrot.slane %v104, 2
    %v106 = vadd.f32 %v104, %v105
    %v107 = vrot.slane %v106, 1
    %v108 = vadd.f32 %v106, %v107
    %v109 = vadd.f32 %v91, %v93
    %v110 = vadd.f32 %v109, %v95
    %v111 = vsel %vm100, %v97, 0.0
    %v112 = vadd.f32 %v110, %v111
    %v113 = vrot.slane %v112, 4
    %v114 = vadd.f32 %v112, %v113
    %v115 = vrot.slane %v114, 2
    %v116 = vadd.f32 %v114, %v115
    %v117 = vrot.slane %v116, 1
    %v118 = vadd.f32 %v116, %v117
    %119 = vrot.lane.b32.xlu0 %v108, 17
    %v120 = vpop.permute.xlu0 %119
    %121 = vrot.lane.b32.xlu0 %v118, 17
    %v122 = vpop.permute.xlu0 %121
    %vm123 = vcmp.lt.s32.totalorder %v20, 17
    %v124 = vsel %vm123, %v120, %v122
    %v125 = vsel %vm123, %v122, %v120
    %v126 = vsel %vm54, %v125, 0.0
    %v127 = vsel %vm55, %v124, 0.0
    %v128 = vadd.f32 %v126, 0.0
    %v129 = vadd.f32 %v127, 0.0
    %130 = vset.pattern.permute.xlu0 1
    %131 = vperm.xlu0 %130, %v15
    %v132 = vpop.permute.xlu0 %131
    %134 = vset.pattern.permute.xlu0 1
    %135 = vperm.xlu0 %134, %v16
    %v136 = vpop.permute.xlu0 %135
    %138 = vset.pattern.permute.xlu0 1
    %139 = vperm.xlu0 %138, %v17
    %v140 = vpop.permute.xlu0 %139
    %142 = vset.pattern.permute.xlu0 1
    %143 = vperm.xlu0 %142, %v18
    %v144 = vpop.permute.xlu0 %143
    %v146 = vmul.f32 %v62, %v132
    %v147 = vmul.f32 %v63, %v132
    %v148 = vmul.f32 %v64, %v136
    %v149 = vmul.f32 %v65, %v136
    %v150 = vmul.f32 %v66, %v140
    %v151 = vmul.f32 %v67, %v140
    %v152 = vmul.f32 %v68, %v144
    %v153 = vmul.f32 %v69, %v144
    %v154 = vadd.f32 %v146, %v148
    %v155 = vadd.f32 %v154, %v150
    %v156 = vsel %vm100, %v152, 0.0
    %v157 = vadd.f32 %v155, %v156
    %v158 = vrot.slane %v157, 4
    %v159 = vadd.f32 %v157, %v158
    %v160 = vrot.slane %v159, 2
    %v161 = vadd.f32 %v159, %v160
    %v162 = vrot.slane %v161, 1
    %v163 = vadd.f32 %v161, %v162
    %v164 = vadd.f32 %v147, %v149
    %v165 = vadd.f32 %v164, %v151
    %v166 = vsel %vm100, %v153, 0.0
    %v167 = vadd.f32 %v165, %v166
    %v168 = vrot.slane %v167, 4
    %v169 = vadd.f32 %v167, %v168
    %v170 = vrot.slane %v169, 2
    %v171 = vadd.f32 %v169, %v170
    %v172 = vrot.slane %v171, 1
    %v173 = vadd.f32 %v171, %v172
    %174 = vrot.lane.b32.xlu0 %v163, 16
    %v175 = vpop.permute.xlu0 %174
    %176 = vrot.lane.b32.xlu0 %v173, 16
    %v177 = vpop.permute.xlu0 %176
    %vm178 = vcmp.lt.s32.totalorder %v20, 16
    %v179 = vsel %vm178, %v175, %v177
    %v180 = vsel %vm178, %v177, %v175
    %v181 = vsel %vm50, %v180, 0.0
    %v182 = vsel %vm51, %v179, 0.0
    %v183 = vadd.f32 %v128, %v181
    %v184 = vadd.f32 %v129, %v182
    %185 = vset.pattern.permute.xlu0 2
    %186 = vperm.xlu0 %185, %v15
    %v187 = vpop.permute.xlu0 %186
    %189 = vset.pattern.permute.xlu0 2
    %190 = vperm.xlu0 %189, %v16
    %v191 = vpop.permute.xlu0 %190
    %193 = vset.pattern.permute.xlu0 2
    %194 = vperm.xlu0 %193, %v17
    %v195 = vpop.permute.xlu0 %194
    %197 = vset.pattern.permute.xlu0 2
    %198 = vperm.xlu0 %197, %v18
    %v199 = vpop.permute.xlu0 %198
    %v201 = vmul.f32 %v62, %v187
    %v202 = vmul.f32 %v63, %v187
    %v203 = vmul.f32 %v64, %v191
    %v204 = vmul.f32 %v65, %v191
    %v205 = vmul.f32 %v66, %v195
    %v206 = vmul.f32 %v67, %v195
    %v207 = vmul.f32 %v68, %v199
    %v208 = vmul.f32 %v69, %v199
    %v209 = vadd.f32 %v201, %v203
    %v210 = vadd.f32 %v209, %v205
    %v211 = vsel %vm100, %v207, 0.0
    %v212 = vadd.f32 %v210, %v211
    %v213 = vrot.slane %v212, 4
    %v214 = vadd.f32 %v212, %v213
    %v215 = vrot.slane %v214, 2
    %v216 = vadd.f32 %v214, %v215
    %v217 = vrot.slane %v216, 1
    %v218 = vadd.f32 %v216, %v217
    %v219 = vadd.f32 %v202, %v204
    %v220 = vadd.f32 %v219, %v206
    %v221 = vsel %vm100, %v208, 0.0
    %v222 = vadd.f32 %v220, %v221
    %v223 = vrot.slane %v222, 4
    %v224 = vadd.f32 %v222, %v223
    %v225 = vrot.slane %v224, 2
    %v226 = vadd.f32 %v224, %v225
    %v227 = vrot.slane %v226, 1
    %v228 = vadd.f32 %v226, %v227
    %229 = vrot.lane.b32.xlu0 %v218, 15
    %v230 = vpop.permute.xlu0 %229
    %231 = vrot.lane.b32.xlu0 %v228, 15
    %v232 = vpop.permute.xlu0 %231
    %vm233 = vcmp.lt.s32.totalorder %v20, 15
    %v234 = vsel %vm233, %v230, %v232
    %v235 = vsel %vm233, %v232, %v230
    %v236 = vsel %vm56, %v235, 0.0
    %v237 = vsel %vm57, %v234, 0.0
    %v238 = vadd.f32 %v183, %v236
    %v239 = vadd.f32 %v184, %v237
    %240 = vset.pattern.permute.xlu0 3
    %241 = vperm.xlu0 %240, %v15
    %v242 = vpop.permute.xlu0 %241
    %244 = vset.pattern.permute.xlu0 3
    %245 = vperm.xlu0 %244, %v16
    %v246 = vpop.permute.xlu0 %245
    %248 = vset.pattern.permute.xlu0 3
    %249 = vperm.xlu0 %248, %v17
    %v250 = vpop.permute.xlu0 %249
    %252 = vset.pattern.permute.xlu0 3
    %253 = vperm.xlu0 %252, %v18
    %v254 = vpop.permute.xlu0 %253
    %v256 = vmul.f32 %v62, %v242
    %v257 = vmul.f32 %v63, %v242
    %v258 = vmul.f32 %v64, %v246
    %v259 = vmul.f32 %v65, %v246
    %v260 = vmul.f32 %v66, %v250
    %v261 = vmul.f32 %v67, %v250
    %v262 = vmul.f32 %v68, %v254
    %v263 = vmul.f32 %v69, %v254
    %v264 = vadd.f32 %v256, %v258
    %v265 = vadd.f32 %v264, %v260
    %v266 = vsel %vm100, %v262, 0.0
    %v267 = vadd.f32 %v265, %v266
    %v268 = vrot.slane %v267, 4
    %v269 = vadd.f32 %v267, %v268
    %v270 = vrot.slane %v269, 2
    %v271 = vadd.f32 %v269, %v270
    %v272 = vrot.slane %v271, 1
    %v273 = vadd.f32 %v271, %v272
    %v274 = vadd.f32 %v257, %v259
    %v275 = vadd.f32 %v274, %v261
    %v276 = vsel %vm100, %v263, 0.0
    %v277 = vadd.f32 %v275, %v276
    %v278 = vrot.slane %v277, 4
    %v279 = vadd.f32 %v277, %v278
    %v280 = vrot.slane %v279, 2
    %v281 = vadd.f32 %v279, %v280
    %v282 = vrot.slane %v281, 1
    %v283 = vadd.f32 %v281, %v282
    %284 = vrot.lane.b32.xlu0 %v273, 1
    %v285 = vpop.permute.xlu0 %284
    %286 = vrot.lane.b32.xlu0 %v283, 1
    %v287 = vpop.permute.xlu0 %286
    %vm288 = vcmp.lt.s32.totalorder %v20, 1
    %v289 = vsel %vm288, %v285, %v287
    %v290 = vsel %vm288, %v287, %v285
    %v291 = vsel %vm46, %v290, 0.0
    %v292 = vsel %vm47, %v289, 0.0
    %v293 = vadd.f32 %v238, %v291
    %v294 = vadd.f32 %v239, %v292
    %295 = vset.pattern.permute.xlu0 4
    %296 = vperm.xlu0 %295, %v15
    %v297 = vpop.permute.xlu0 %296
    %299 = vset.pattern.permute.xlu0 4
    %300 = vperm.xlu0 %299, %v16
    %v301 = vpop.permute.xlu0 %300
    %303 = vset.pattern.permute.xlu0 4
    %304 = vperm.xlu0 %303, %v17
    %v305 = vpop.permute.xlu0 %304
    %307 = vset.pattern.permute.xlu0 4
    %308 = vperm.xlu0 %307, %v18
    %v309 = vpop.permute.xlu0 %308
    %v311 = vmul.f32 %v62, %v297
    %v312 = vmul.f32 %v63, %v297
    %v313 = vmul.f32 %v64, %v301
    %v314 = vmul.f32 %v65, %v301
    %v315 = vmul.f32 %v66, %v305
    %v316 = vmul.f32 %v67, %v305
    %v317 = vmul.f32 %v68, %v309
    %v318 = vmul.f32 %v69, %v309
    %v319 = vadd.f32 %v311, %v313
    %v320 = vadd.f32 %v319, %v315
    %v321 = vsel %vm100, %v317, 0.0
    %v322 = vadd.f32 %v320, %v321
    %v323 = vrot.slane %v322, 4
    %v324 = vadd.f32 %v322, %v323
    %v325 = vrot.slane %v324, 2
    %v326 = vadd.f32 %v324, %v325
    %v327 = vrot.slane %v326, 1
    %v328 = vadd.f32 %v326, %v327
    %v329 = vadd.f32 %v312, %v314
    %v330 = vadd.f32 %v329, %v316
    %v331 = vsel %vm100, %v318, 0.0
    %v332 = vadd.f32 %v330, %v331
    %v333 = vrot.slane %v332, 4
    %v334 = vadd.f32 %v332, %v333
    %v335 = vrot.slane %v334, 2
    %v336 = vadd.f32 %v334, %v335
    %v337 = vrot.slane %v336, 1
    %v338 = vadd.f32 %v336, %v337
    %v339 = vadd.f32 %v293, %v328
    %v340 = vadd.f32 %v294, %v338
    %341 = vset.pattern.permute.xlu0 5
    %342 = vperm.xlu0 %341, %v15
    %v343 = vpop.permute.xlu0 %342
    %345 = vset.pattern.permute.xlu0 5
    %346 = vperm.xlu0 %345, %v16
    %v347 = vpop.permute.xlu0 %346
    %349 = vset.pattern.permute.xlu0 5
    %350 = vperm.xlu0 %349, %v17
    %v351 = vpop.permute.xlu0 %350
    %353 = vset.pattern.permute.xlu0 5
    %354 = vperm.xlu0 %353, %v18
    %v355 = vpop.permute.xlu0 %354
    %v357 = vmul.f32 %v62, %v343
    %v358 = vmul.f32 %v63, %v343
    %v359 = vmul.f32 %v64, %v347
    %v360 = vmul.f32 %v65, %v347
    %v361 = vmul.f32 %v66, %v351
    %v362 = vmul.f32 %v67, %v351
    %v363 = vmul.f32 %v68, %v355
    %v364 = vmul.f32 %v69, %v355
    %v365 = vadd.f32 %v357, %v359
    %v366 = vadd.f32 %v365, %v361
    %v367 = vsel %vm100, %v363, 0.0
    %v368 = vadd.f32 %v366, %v367
    %v369 = vrot.slane %v368, 4
    %v370 = vadd.f32 %v368, %v369
    %v371 = vrot.slane %v370, 2
    %v372 = vadd.f32 %v370, %v371
    %v373 = vrot.slane %v372, 1
    %v374 = vadd.f32 %v372, %v373
    %v375 = vadd.f32 %v358, %v360
    %v376 = vadd.f32 %v375, %v362
    %v377 = vsel %vm100, %v364, 0.0
    %v378 = vadd.f32 %v376, %v377
    %v379 = vrot.slane %v378, 4
    %v380 = vadd.f32 %v378, %v379
    %v381 = vrot.slane %v380, 2
    %v382 = vadd.f32 %v380, %v381
    %v383 = vrot.slane %v382, 1
    %v384 = vadd.f32 %v382, %v383
    %385 = vrot.lane.b32.xlu0 %v374, 127
    %v386 = vpop.permute.xlu0 %385
    %387 = vrot.lane.b32.xlu0 %v384, 127
    %v388 = vpop.permute.xlu0 %387
    %vm389 = vcmp.lt.s32.totalorder %v20, 127
    %v390 = vsel %vm389, %v386, %v388
    %v391 = vsel %vm389, %v388, %v386
    %v392 = vsel %vm48, %v390, 0.0
    %v393 = vsel %vm49, %v391, 0.0
    %v394 = vadd.f32 %v339, %v392
    %v395 = vadd.f32 %v340, %v393
    %396 = vset.pattern.permute.xlu0 6
    %397 = vperm.xlu0 %396, %v15
    %v398 = vpop.permute.xlu0 %397
    %400 = vset.pattern.permute.xlu0 6
    %401 = vperm.xlu0 %400, %v16
    %v402 = vpop.permute.xlu0 %401
    %404 = vset.pattern.permute.xlu0 6
    %405 = vperm.xlu0 %404, %v17
    %v406 = vpop.permute.xlu0 %405
    %408 = vset.pattern.permute.xlu0 6
    %409 = vperm.xlu0 %408, %v18
    %v410 = vpop.permute.xlu0 %409
    %v412 = vmul.f32 %v62, %v398
    %v413 = vmul.f32 %v63, %v398
    %v414 = vmul.f32 %v64, %v402
    %v415 = vmul.f32 %v65, %v402
    %v416 = vmul.f32 %v66, %v406
    %v417 = vmul.f32 %v67, %v406
    %v418 = vmul.f32 %v68, %v410
    %v419 = vmul.f32 %v69, %v410
    %v420 = vadd.f32 %v412, %v414
    %v421 = vadd.f32 %v420, %v416
    %v422 = vsel %vm100, %v418, 0.0
    %v423 = vadd.f32 %v421, %v422
    %v424 = vrot.slane %v423, 4
    %v425 = vadd.f32 %v423, %v424
    %v426 = vrot.slane %v425, 2
    %v427 = vadd.f32 %v425, %v426
    %v428 = vrot.slane %v427, 1
    %v429 = vadd.f32 %v427, %v428
    %v430 = vadd.f32 %v413, %v415
    %v431 = vadd.f32 %v430, %v417
    %v432 = vsel %vm100, %v419, 0.0
    %v433 = vadd.f32 %v431, %v432
    %v434 = vrot.slane %v433, 4
    %v435 = vadd.f32 %v433, %v434
    %v436 = vrot.slane %v435, 2
    %v437 = vadd.f32 %v435, %v436
    %v438 = vrot.slane %v437, 1
    %v439 = vadd.f32 %v437, %v438
    %440 = vrot.lane.b32.xlu0 %v429, 113
    %v441 = vpop.permute.xlu0 %440
    %442 = vrot.lane.b32.xlu0 %v439, 113
    %v443 = vpop.permute.xlu0 %442
    %vm444 = vcmp.lt.s32.totalorder %v20, 113
    %v445 = vsel %vm444, %v441, %v443
    %v446 = vsel %vm444, %v443, %v441
    %v447 = vsel %vm58, %v445, 0.0
    %v448 = vsel %vm59, %v446, 0.0
    %v449 = vadd.f32 %v394, %v447
    %v450 = vadd.f32 %v395, %v448
    %451 = vset.pattern.permute.xlu0 7
    %452 = vperm.xlu0 %451, %v15
    %v453 = vpop.permute.xlu0 %452
    %455 = vset.pattern.permute.xlu0 7
    %456 = vperm.xlu0 %455, %v16
    %v457 = vpop.permute.xlu0 %456
    %459 = vset.pattern.permute.xlu0 7
    %460 = vperm.xlu0 %459, %v17
    %v461 = vpop.permute.xlu0 %460
    %463 = vset.pattern.permute.xlu0 7
    %464 = vperm.xlu0 %463, %v18
    %v465 = vpop.permute.xlu0 %464
    %v467 = vmul.f32 %v62, %v453
    %v468 = vmul.f32 %v63, %v453
    %v469 = vmul.f32 %v64, %v457
    %v470 = vmul.f32 %v65, %v457
    %v471 = vmul.f32 %v66, %v461
    %v472 = vmul.f32 %v67, %v461
    %v473 = vmul.f32 %v68, %v465
    %v474 = vmul.f32 %v69, %v465
    %v475 = vadd.f32 %v467, %v469
    %v476 = vadd.f32 %v475, %v471
    %v477 = vsel %vm100, %v473, 0.0
    %v478 = vadd.f32 %v476, %v477
    %v479 = vrot.slane %v478, 4
    %v480 = vadd.f32 %v478, %v479
    %v481 = vrot.slane %v480, 2
    %v482 = vadd.f32 %v480, %v481
    %v483 = vrot.slane %v482, 1
    %v484 = vadd.f32 %v482, %v483
    %v485 = vadd.f32 %v468, %v470
    %v486 = vadd.f32 %v485, %v472
    %v487 = vsel %vm100, %v474, 0.0
    %v488 = vadd.f32 %v486, %v487
    %v489 = vrot.slane %v488, 4
    %v490 = vadd.f32 %v488, %v489
    %v491 = vrot.slane %v490, 2
    %v492 = vadd.f32 %v490, %v491
    %v493 = vrot.slane %v492, 1
    %v494 = vadd.f32 %v492, %v493
    %495 = vrot.lane.b32.xlu0 %v484, 112
    %v496 = vpop.permute.xlu0 %495
    %497 = vrot.lane.b32.xlu0 %v494, 112
    %v498 = vpop.permute.xlu0 %497
    %vm499 = vcmp.lt.s32.totalorder %v20, 112
    %v500 = vsel %vm499, %v496, %v498
    %v501 = vsel %vm499, %v498, %v496
    %v502 = vsel %vm52, %v500, 0.0
    %v503 = vsel %vm53, %v501, 0.0
    %v504 = vadd.f32 %v449, %v502
    %v505 = vadd.f32 %v450, %v503
    %506 = vset.pattern.permute.xlu0 8
    %507 = vperm.xlu0 %506, %v15
    %v508 = vpop.permute.xlu0 %507
    %510 = vset.pattern.permute.xlu0 8
    %511 = vperm.xlu0 %510, %v16
    %v512 = vpop.permute.xlu0 %511
    %514 = vset.pattern.permute.xlu0 8
    %515 = vperm.xlu0 %514, %v17
    %v516 = vpop.permute.xlu0 %515
    %518 = vset.pattern.permute.xlu0 8
    %519 = vperm.xlu0 %518, %v18
    %v520 = vpop.permute.xlu0 %519
    %v522 = vmul.f32 %v62, %v508
    %v523 = vmul.f32 %v63, %v508
    %v524 = vmul.f32 %v64, %v512
    %v525 = vmul.f32 %v65, %v512
    %v526 = vmul.f32 %v66, %v516
    %v527 = vmul.f32 %v67, %v516
    %v528 = vmul.f32 %v68, %v520
    %v529 = vmul.f32 %v69, %v520
    %v530 = vadd.f32 %v522, %v524
    %v531 = vadd.f32 %v530, %v526
    %v532 = vsel %vm100, %v528, 0.0
    %v533 = vadd.f32 %v531, %v532
    %v534 = vrot.slane %v533, 4
    %v535 = vadd.f32 %v533, %v534
    %v536 = vrot.slane %v535, 2
    %v537 = vadd.f32 %v535, %v536
    %v538 = vrot.slane %v537, 1
    %v539 = vadd.f32 %v537, %v538
    %v540 = vadd.f32 %v523, %v525
    %v541 = vadd.f32 %v540, %v527
    %v542 = vsel %vm100, %v529, 0.0
    %v543 = vadd.f32 %v541, %v542
    %v544 = vrot.slane %v543, 4
    %v545 = vadd.f32 %v543, %v544
    %v546 = vrot.slane %v545, 2
    %v547 = vadd.f32 %v545, %v546
    %v548 = vrot.slane %v547, 1
    %v549 = vadd.f32 %v547, %v548
    %550 = vrot.lane.b32.xlu0 %v539, 111
    %v551 = vpop.permute.xlu0 %550
    %552 = vrot.lane.b32.xlu0 %v549, 111
    %v553 = vpop.permute.xlu0 %552
    %vm554 = vcmp.lt.s32.totalorder %v20, 111
    %v555 = vsel %vm554, %v551, %v553
    %v556 = vsel %vm554, %v553, %v551
    %v557 = vsel %vm60, %v555, 0.0
    %v558 = vsel %vm61, %v556, 0.0
    %v559 = vadd.f32 %v504, %v557
    %v560 = vadd.f32 %v505, %v558
    %v561 = vstv %s14
    %v562 = vadd.f32 %v559, %v561
    %v563 = vadd.f32 %v560, %v561
    %v566 = vcombine.low %v562, %v563
    %v568 = vunpack.c.l.s4 1966171168
    %v569 = vunpack.c.0.s8 %v568
    %v570 = vlaneseq
    %v571 = vshrl.u32 %v570, 7
    %v572 = vsub.s32 %v569, %v571
    %v573 = vrot.slane %v566, %v572
    %v575 = vunpack.c.l.s4 1966171168
    %v576 = vunpack.c.0.s8 %v575
    %v577 = vlaneseq
    %v578 = vshrl.u32 %v577, 7
    %v579 = vsub.s32 %v576, %v578
    %v580 = vrot.slane %v573, %v579
    %v582 = vlaneseq
    %vm583 = vcmp.ge.s32.totalorder %v582, 0
    %vm584 = vcmp.lt.s32.totalorder %v582, 256
    %vm585 = vmand %vm583, %vm584
    %586 = vst.msk [vmem:[#allocation4] sm:$0x3] %vm585, %v580
    %s587 = scalar_lea.vmem %s2, 64
    %v588 = vld [vmem:[%s587] sm:$0xff]
    %v589 = vld [vmem:[%s587 + $0x8] sm:$0xff]
    %v590 = vld [vmem:[%s587 + $0x10] sm:$0xff]
    %v591 = vld [vmem:[%s587 + $0x18] sm:$0xff]
    %v592 = vld [vmem:[%s587 + $0x20] sm:$0xff]
    %v593 = vld [vmem:[%s587 + $0x28] sm:$0xff]
    %v594 = vld [vmem:[%s587 + $0x30] sm:$0x3f]
    %v595 = vld [vmem:[%s587 + $0x38] sm:$0x3f]
    %v596 = vmul.f32 %v588, %v73
    %v597 = vmul.f32 %v589, %v73
    %v598 = vmul.f32 %v590, %v78
    %v599 = vmul.f32 %v591, %v78
    %v600 = vmul.f32 %v592, %v83
    %v601 = vmul.f32 %v593, %v83
    %v602 = vmul.f32 %v594, %v88
    %v603 = vmul.f32 %v595, %v88
    %v604 = vadd.f32 %v596, %v598
    %v605 = vadd.f32 %v604, %v600
    %v606 = vsel %vm100, %v602, 0.0
    %v607 = vadd.f32 %v605, %v606
    %v608 = vrot.slane %v607, 4
    %v609 = vadd.f32 %v607, %v608
    %v610 = vrot.slane %v609, 2
    %v611 = vadd.f32 %v609, %v610
    %v612 = vrot.slane %v611, 1
    %v613 = vadd.f32 %v611, %v612
    %v614 = vadd.f32 %v597, %v599
    %v615 = vadd.f32 %v614, %v601
    %v616 = vsel %vm100, %v603, 0.0
    %v617 = vadd.f32 %v615, %v616
    %v618 = vrot.slane %v617, 4
    %v619 = vadd.f32 %v617, %v618
    %v620 = vrot.slane %v619, 2
    %v621 = vadd.f32 %v619, %v620
    %v622 = vrot.slane %v621, 1
    %v623 = vadd.f32 %v621, %v622
    %624 = vrot.lane.b32.xlu0 %v613, 17
    %v625 = vpop.permute.xlu0 %624
    %626 = vrot.lane.b32.xlu0 %v623, 17
    %v627 = vpop.permute.xlu0 %626
    %v628 = vsel %vm123, %v625, %v627
    %v629 = vsel %vm123, %v627, %v625
    %v630 = vsel %vm54, %v629, 0.0
    %v631 = vsel %vm55, %v628, 0.0
    %v632 = vadd.f32 %v630, 0.0
    %v633 = vadd.f32 %v631, 0.0
    %v634 = vmul.f32 %v588, %v132
    %v635 = vmul.f32 %v589, %v132
    %v636 = vmul.f32 %v590, %v136
    %v637 = vmul.f32 %v591, %v136
    %v638 = vmul.f32 %v592, %v140
    %v639 = vmul.f32 %v593, %v140
    %v640 = vmul.f32 %v594, %v144
    %v641 = vmul.f32 %v595, %v144
    %v642 = vadd.f32 %v634, %v636
    %v643 = vadd.f32 %v642, %v638
    %v644 = vsel %vm100, %v640, 0.0
    %v645 = vadd.f32 %v643, %v644
    %v646 = vrot.slane %v645, 4
    %v647 = vadd.f32 %v645, %v646
    %v648 = vrot.slane %v647, 2
    %v649 = vadd.f32 %v647, %v648
    %v650 = vrot.slane %v649, 1
    %v651 = vadd.f32 %v649, %v650
    %v652 = vadd.f32 %v635, %v637
    %v653 = vadd.f32 %v652, %v639
    %v654 = vsel %vm100, %v641, 0.0
    %v655 = vadd.f32 %v653, %v654
    %v656 = vrot.slane %v655, 4
    %v657 = vadd.f32 %v655, %v656
    %v658 = vrot.slane %v657, 2
    %v659 = vadd.f32 %v657, %v658
    %v660 = vrot.slane %v659, 1
    %v661 = vadd.f32 %v659, %v660
    %662 = vrot.lane.b32.xlu0 %v651, 16
    %v663 = vpop.permute.xlu0 %662
    %664 = vrot.lane.b32.xlu0 %v661, 16
    %v665 = vpop.permute.xlu0 %664
    %v666 = vsel %vm178, %v663, %v665
    %v667 = vsel %vm178, %v665, %v663
    %v668 = vsel %vm50, %v667, 0.0
    %v669 = vsel %vm51, %v666, 0.0
    %v670 = vadd.f32 %v632, %v668
    %v671 = vadd.f32 %v633, %v669
    %v672 = vmul.f32 %v588, %v187
    %v673 = vmul.f32 %v589, %v187
    %v674 = vmul.f32 %v590, %v191
    %v675 = vmul.f32 %v591, %v191
    %v676 = vmul.f32 %v592, %v195
    %v677 = vmul.f32 %v593, %v195
    %v678 = vmul.f32 %v594, %v199
    %v679 = vmul.f32 %v595, %v199
    %v680 = vadd.f32 %v672, %v674
    %v681 = vadd.f32 %v680, %v676
    %v682 = vsel %vm100, %v678, 0.0
    %v683 = vadd.f32 %v681, %v682
    %v684 = vrot.slane %v683, 4
    %v685 = vadd.f32 %v683, %v684
    %v686 = vrot.slane %v685, 2
    %v687 = vadd.f32 %v685, %v686
    %v688 = vrot.slane %v687, 1
    %v689 = vadd.f32 %v687, %v688
    %v690 = vadd.f32 %v673, %v675
    %v691 = vadd.f32 %v690, %v677
    %v692 = vsel %vm100, %v679, 0.0
    %v693 = vadd.f32 %v691, %v692
    %v694 = vrot.slane %v693, 4
    %v695 = vadd.f32 %v693, %v694
    %v696 = vrot.slane %v695, 2
    %v697 = vadd.f32 %v695, %v696
    %v698 = vrot.slane %v697, 1
    %v699 = vadd.f32 %v697, %v698
    %700 = vrot.lane.b32.xlu0 %v689, 15
    %v701 = vpop.permute.xlu0 %700
    %702 = vrot.lane.b32.xlu0 %v699, 15
    %v703 = vpop.permute.xlu0 %702
    %v704 = vsel %vm233, %v701, %v703
    %v705 = vsel %vm233, %v703, %v701
    %v706 = vsel %vm56, %v705, 0.0
    %v707 = vsel %vm57, %v704, 0.0
    %v708 = vadd.f32 %v670, %v706
    %v709 = vadd.f32 %v671, %v707
    %v710 = vmul.f32 %v588, %v242
    %v711 = vmul.f32 %v589, %v242
    %v712 = vmul.f32 %v590, %v246
    %v713 = vmul.f32 %v591, %v246
    %v714 = vmul.f32 %v592, %v250
    %v715 = vmul.f32 %v593, %v250
    %v716 = vmul.f32 %v594, %v254
    %v717 = vmul.f32 %v595, %v254
    %v718 = vadd.f32 %v710, %v712
    %v719 = vadd.f32 %v718, %v714
    %v720 = vsel %vm100, %v716, 0.0
    %v721 = vadd.f32 %v719, %v720
    %v722 = vrot.slane %v721, 4
    %v723 = vadd.f32 %v721, %v722
    %v724 = vrot.slane %v723, 2
    %v725 = vadd.f32 %v723, %v724
    %v726 = vrot.slane %v725, 1
    %v727 = vadd.f32 %v725, %v726
    %v728 = vadd.f32 %v711, %v713
    %v729 = vadd.f32 %v728, %v715
    %v730 = vsel %vm100, %v717, 0.0
    %v731 = vadd.f32 %v729, %v730
    %v732 = vrot.slane %v731, 4
    %v733 = vadd.f32 %v731, %v732
    %v734 = vrot.slane %v733, 2
    %v735 = vadd.f32 %v733, %v734
    %v736 = vrot.slane %v735, 1
    %v737 = vadd.f32 %v735, %v736
    %738 = vrot.lane.b32.xlu0 %v727, 1
    %v739 = vpop.permute.xlu0 %738
    %740 = vrot.lane.b32.xlu0 %v737, 1
    %v741 = vpop.permute.xlu0 %740
    %v742 = vsel %vm288, %v739, %v741
    %v743 = vsel %vm288, %v741, %v739
    %v744 = vsel %vm46, %v743, 0.0
    %v745 = vsel %vm47, %v742, 0.0
    %v746 = vadd.f32 %v708, %v744
    %v747 = vadd.f32 %v709, %v745
    %v748 = vmul.f32 %v588, %v297
    %v749 = vmul.f32 %v589, %v297
    %v750 = vmul.f32 %v590, %v301
    %v751 = vmul.f32 %v591, %v301
    %v752 = vmul.f32 %v592, %v305
    %v753 = vmul.f32 %v593, %v305
    %v754 = vmul.f32 %v594, %v309
    %v755 = vmul.f32 %v595, %v309
    %v756 = vadd.f32 %v748, %v750
    %v757 = vadd.f32 %v756, %v752
    %v758 = vsel %vm100, %v754, 0.0
    %v759 = vadd.f32 %v757, %v758
    %v760 = vrot.slane %v759, 4
    %v761 = vadd.f32 %v759, %v760
    %v762 = vrot.slane %v761, 2
    %v763 = vadd.f32 %v761, %v762
    %v764 = vrot.slane %v763, 1
    %v765 = vadd.f32 %v763, %v764
    %v766 = vadd.f32 %v749, %v751
    %v767 = vadd.f32 %v766, %v753
    %v768 = vsel %vm100, %v755, 0.0
    %v769 = vadd.f32 %v767, %v768
    %v770 = vrot.slane %v769, 4
    %v771 = vadd.f32 %v769, %v770
    %v772 = vrot.slane %v771, 2
    %v773 = vadd.f32 %v771, %v772
    %v774 = vrot.slane %v773, 1
    %v775 = vadd.f32 %v773, %v774
    %v776 = vadd.f32 %v746, %v765
    %v777 = vadd.f32 %v747, %v775
    %v778 = vmul.f32 %v588, %v343
    %v779 = vmul.f32 %v589, %v343
    %v780 = vmul.f32 %v590, %v347
    %v781 = vmul.f32 %v591, %v347
    %v782 = vmul.f32 %v592, %v351
    %v783 = vmul.f32 %v593, %v351
    %v784 = vmul.f32 %v594, %v355
    %v785 = vmul.f32 %v595, %v355
    %v786 = vadd.f32 %v778, %v780
    %v787 = vadd.f32 %v786, %v782
    %v788 = vsel %vm100, %v784, 0.0
    %v789 = vadd.f32 %v787, %v788
    %v790 = vrot.slane %v789, 4
    %v791 = vadd.f32 %v789, %v790
    %v792 = vrot.slane %v791, 2
    %v793 = vadd.f32 %v791, %v792
    %v794 = vrot.slane %v793, 1
    %v795 = vadd.f32 %v793, %v794
    %v796 = vadd.f32 %v779, %v781
    %v797 = vadd.f32 %v796, %v783
    %v798 = vsel %vm100, %v785, 0.0
    %v799 = vadd.f32 %v797, %v798
    %v800 = vrot.slane %v799, 4
    %v801 = vadd.f32 %v799, %v800
    %v802 = vrot.slane %v801, 2
    %v803 = vadd.f32 %v801, %v802
    %v804 = vrot.slane %v803, 1
    %v805 = vadd.f32 %v803, %v804
    %806 = vrot.lane.b32.xlu0 %v795, 127
    %v807 = vpop.permute.xlu0 %806
    %808 = vrot.lane.b32.xlu0 %v805, 127
    %v809 = vpop.permute.xlu0 %808
    %v810 = vsel %vm389, %v807, %v809
    %v811 = vsel %vm389, %v809, %v807
    %v812 = vsel %vm48, %v810, 0.0
    %v813 = vsel %vm49, %v811, 0.0
    %v814 = vadd.f32 %v776, %v812
    %v815 = vadd.f32 %v777, %v813
    %v816 = vmul.f32 %v588, %v398
    %v817 = vmul.f32 %v589, %v398
    %v818 = vmul.f32 %v590, %v402
    %v819 = vmul.f32 %v591, %v402
    %v820 = vmul.f32 %v592, %v406
    %v821 = vmul.f32 %v593, %v406
    %v822 = vmul.f32 %v594, %v410
    %v823 = vmul.f32 %v595, %v410
    %v824 = vadd.f32 %v816, %v818
    %v825 = vadd.f32 %v824, %v820
    %v826 = vsel %vm100, %v822, 0.0
    %v827 = vadd.f32 %v825, %v826
    %v828 = vrot.slane %v827, 4
    %v829 = vadd.f32 %v827, %v828
    %v830 = vrot.slane %v829, 2
    %v831 = vadd.f32 %v829, %v830
    %v832 = vrot.slane %v831, 1
    %v833 = vadd.f32 %v831, %v832
    %v834 = vadd.f32 %v817, %v819
    %v835 = vadd.f32 %v834, %v821
    %v836 = vsel %vm100, %v823, 0.0
    %v837 = vadd.f32 %v835, %v836
    %v838 = vrot.slane %v837, 4
    %v839 = vadd.f32 %v837, %v838
    %v840 = vrot.slane %v839, 2
    %v841 = vadd.f32 %v839, %v840
    %v842 = vrot.slane %v841, 1
    %v843 = vadd.f32 %v841, %v842
    %844 = vrot.lane.b32.xlu0 %v833, 113
    %v845 = vpop.permute.xlu0 %844
    %846 = vrot.lane.b32.xlu0 %v843, 113
    %v847 = vpop.permute.xlu0 %846
    %v848 = vsel %vm444, %v845, %v847
    %v849 = vsel %vm444, %v847, %v845
    %v850 = vsel %vm58, %v848, 0.0
    %v851 = vsel %vm59, %v849, 0.0
    %v852 = vadd.f32 %v814, %v850
    %v853 = vadd.f32 %v815, %v851
    %v854 = vmul.f32 %v588, %v453
    %v855 = vmul.f32 %v589, %v453
    %v856 = vmul.f32 %v590, %v457
    %v857 = vmul.f32 %v591, %v457
    %v858 = vmul.f32 %v592, %v461
    %v859 = vmul.f32 %v593, %v461
    %v860 = vmul.f32 %v594, %v465
    %v861 = vmul.f32 %v595, %v465
    %v862 = vadd.f32 %v854, %v856
    %v863 = vadd.f32 %v862, %v858
    %v864 = vsel %vm100, %v860, 0.0
    %v865 = vadd.f32 %v863, %v864
    %v866 = vrot.slane %v865, 4
    %v867 = vadd.f32 %v865, %v866
    %v868 = vrot.slane %v867, 2
    %v869 = vadd.f32 %v867, %v868
    %v870 = vrot.slane %v869, 1
    %v871 = vadd.f32 %v869, %v870
    %v872 = vadd.f32 %v855, %v857
    %v873 = vadd.f32 %v872, %v859
    %v874 = vsel %vm100, %v861, 0.0
    %v875 = vadd.f32 %v873, %v874
    %v876 = vrot.slane %v875, 4
    %v877 = vadd.f32 %v875, %v876
    %v878 = vrot.slane %v877, 2
    %v879 = vadd.f32 %v877, %v878
    %v880 = vrot.slane %v879, 1
    %v881 = vadd.f32 %v879, %v880
    %882 = vrot.lane.b32.xlu0 %v871, 112
    %v883 = vpop.permute.xlu0 %882
    %884 = vrot.lane.b32.xlu0 %v881, 112
    %v885 = vpop.permute.xlu0 %884
    %v886 = vsel %vm499, %v883, %v885
    %v887 = vsel %vm499, %v885, %v883
    %v888 = vsel %vm52, %v886, 0.0
    %v889 = vsel %vm53, %v887, 0.0
    %v890 = vadd.f32 %v852, %v888
    %v891 = vadd.f32 %v853, %v889
    %v892 = vmul.f32 %v588, %v508
    %v893 = vmul.f32 %v589, %v508
    %v894 = vmul.f32 %v590, %v512
    %v895 = vmul.f32 %v591, %v512
    %v896 = vmul.f32 %v592, %v516
    %v897 = vmul.f32 %v593, %v516
    %v898 = vmul.f32 %v594, %v520
    %v899 = vmul.f32 %v595, %v520
    %v900 = vadd.f32 %v892, %v894
    %v901 = vadd.f32 %v900, %v896
    %v902 = vsel %vm100, %v898, 0.0
    %v903 = vadd.f32 %v901, %v902
    %v904 = vrot.slane %v903, 4
    %v905 = vadd.f32 %v903, %v904
    %v906 = vrot.slane %v905, 2
    %v907 = vadd.f32 %v905, %v906
    %v908 = vrot.slane %v907, 1
    %v909 = vadd.f32 %v907, %v908
    %v910 = vadd.f32 %v893, %v895
    %v911 = vadd.f32 %v910, %v897
    %v912 = vsel %vm100, %v899, 0.0
    %v913 = vadd.f32 %v911, %v912
    %v914 = vrot.slane %v913, 4
    %v915 = vadd.f32 %v913, %v914
    %v916 = vrot.slane %v915, 2
    %v917 = vadd.f32 %v915, %v916
    %v918 = vrot.slane %v917, 1
    %v919 = vadd.f32 %v917, %v918
    %920 = vrot.lane.b32.xlu0 %v909, 111
    %v921 = vpop.permute.xlu0 %920
    %922 = vrot.lane.b32.xlu0 %v919, 111
    %v923 = vpop.permute.xlu0 %922
    %v924 = vsel %vm554, %v921, %v923
    %v925 = vsel %vm554, %v923, %v921
    %v926 = vsel %vm60, %v924, 0.0
    %v927 = vsel %vm61, %v925, 0.0
    %v928 = vadd.f32 %v890, %v926
    %v929 = vadd.f32 %v891, %v927
    %v930 = vadd.f32 %v928, %v561
    %v931 = vadd.f32 %v929, %v561
    %v934 = vcombine.low %v930, %v931
    %v936 = vunpack.c.l.s4 1966171168
    %v937 = vunpack.c.0.s8 %v936
    %v938 = vlaneseq
    %v939 = vshrl.u32 %v938, 7
    %v940 = vsub.s32 %v937, %v939
    %v941 = vrot.slane %v934, %v940
    %v943 = vunpack.c.l.s4 1966171168
    %v944 = vunpack.c.0.s8 %v943
    %v945 = vlaneseq
    %v946 = vshrl.u32 %v945, 7
    %v947 = vsub.s32 %v944, %v946
    %v948 = vrot.slane %v941, %v947
    %s950 = scalar_lea.vmem [#allocation4], 2
    %951 = vst.msk [vmem:[%s950] sm:$0x3] %vm585, %v948
    // Predicated region
    $region10: #{tpu_custom_call.1} parent=1 // pred_check
      _
    $region11: #{tpu_custom_call.1} parent=1 // pred_check_branch
      %953 = sbr.rel (0) target = $region13
    $region12: #{tpu_custom_call.1} parent=1 // pred_region
      %s955 = ssub.s32 64, 64
      %956 = vsyncadd [#allocation5], %s955
      %s957 = sshll.u32 [#allocation4], 4
      %s958 = int_to_ptr.vmem [resolvable:$true] %s957
      %963 = dma.vmem_to_hbm [thread:$0]  %s958, 64, %s3, [#allocation5], 32, 32, 2
    $region13: #{tpu_custom_call.1} parent=1 // pred_fallthru
      _
    // Predicated region
    $region14: #{tpu_custom_call.1} parent=1 // pred_check
      _
    $region15: #{tpu_custom_call.1} parent=1 // pred_check_branch
      %965 = sbr.rel (0) target = $region17
    $region16: #{tpu_custom_call.1} parent=1 // pred_region
      %966 = dma.done [#allocation5], 64
    $region17: #{tpu_custom_call.1} parent=1 // pred_fallthru
      _
    %967 = vsyncpa [#allocation5], 1

</llo_original>
